<compile_context>
chip_gen: v6e
topology: v6e:2x2x1
jax: 0.10.0
libtpu: 0.0.40
codegen_flags: <defaults>
</compile_context>

<pallas_src>
import functools

import jax
import jax.numpy as jnp
from jax.experimental import pallas as pl
from jax.experimental.pallas import tpu as pltpu


def _round_up(x: int, m: int) -> int:
    return ((x + m - 1) // m) * m


def _pick_tile(n: int, c: int, itemsize: int, multiple: int,
               max_tile: int, buf_budget_bytes: int = 4 * 1024 * 1024) -> int:
    """Rows/cols per grid step: keep one logits buffer <= ~4 MiB so that the
    double-buffered pipeline stays well under every generation's scoped VMEM
    (v5e 16 MiB default .. v7x 64 MiB physical)."""
    t = buf_budget_bytes // max(1, c * itemsize)
    t = min(max_tile, max(multiple, t))
    t = max(multiple, (t // multiple) * multiple)
    return min(t, _round_up(n, multiple))


def _f1_from_counts(tp, sum_p, cnt, epsilon, num_classes):
    """Finalize: (1,C)/(C,1) partial sums -> (1,1) loss. fp/fn derived from
    sum_p/count so the per-tile loop never touches them."""
    fp = sum_p - tp
    fn = cnt - tp
    precision = tp / (tp + fp + epsilon)
    recall = tp / (tp + fn + epsilon)
    f1 = 2.0 * (precision * recall) / (precision + recall + epsilon)
    f1 = jnp.clip(f1, epsilon, 1.0 - epsilon)
    mean_f1 = jnp.sum(jnp.sum(f1, axis=0, keepdims=True),
                      axis=1, keepdims=True) / jnp.float32(num_classes)
    return 1.0 - mean_f1


# ----------------------------------------------------------------------------
# Layout 1: C >= 128  ->  (N, C), class axis on lanes, batch tiled on sublanes.
# ----------------------------------------------------------------------------
def _f1_kernel_classes_on_lanes(labels_ref, logits_ref, out_ref,
                                tp_acc, sp_acc, cnt_acc, *,
                                epsilon, num_classes, num_rows, tile_rows):
    step = pl.program_id(0)

    @pl.when(step == 0)
    def _init():
        tp_acc[...] = jnp.zeros_like(tp_acc)
        sp_acc[...] = jnp.zeros_like(sp_acc)
        cnt_acc[...] = jnp.zeros_like(cnt_acc)

    logits = logits_ref[...].astype(jnp.float32)       # (tile_rows, C)
    labels = labels_ref[...]                           # (tile_rows, 1) int32

    # softmax over the class (lane) axis; EUP reciprocal instead of a divide.
    m = jnp.max(logits, axis=1, keepdims=True)
    e = jnp.exp(logits - m)
    p = e * pl.reciprocal(jnp.sum(e, axis=1, keepdims=True), approx=True)

    class_ids = jax.lax.broadcasted_iota(jnp.int32, (tile_rows, num_classes), 1)
    y_true = (labels == class_ids).astype(jnp.float32)

    if num_rows % tile_rows != 0:       # static: mask padded rows of last tile
        row_ids = (jax.lax.broadcasted_iota(jnp.int32, (tile_rows, 1), 0)
                   + step * tile_rows)
        valid = (row_ids < num_rows).astype(jnp.float32)
        p = p * valid
        y_true = y_true * valid

    tp_acc[...] += jnp.sum(y_true * p, axis=0, keepdims=True)   # (1, C)
    sp_acc[...] += jnp.sum(p, axis=0, keepdims=True)            # (1, C)
    cnt_acc[...] += jnp.sum(y_true, axis=0, keepdims=True)      # (1, C)

    @pl.when(step == pl.num_programs(0) - 1)
    def _finalize():
        out_ref[...] = _f1_from_counts(tp_acc[...], sp_acc[...], cnt_acc[...],
                                       epsilon, num_classes)


# ----------------------------------------------------------------------------
# Layout 2: C < 128  ->  (C, N), batch axis on lanes (lane-dense), batch tiled
# on lanes; per-class sums reduce over the lane axis.
# ----------------------------------------------------------------------------
def _f1_kernel_batch_on_lanes(labels_ref, logits_ref, out_ref,
                              tp_acc, sp_acc, cnt_acc, *,
                              epsilon, num_classes, num_rows, tile_cols):
    step = pl.program_id(0)

    @pl.when(step == 0)
    def _init():
        tp_acc[...] = jnp.zeros_like(tp_acc)
        sp_acc[...] = jnp.zeros_like(sp_acc)
        cnt_acc[...] = jnp.zeros_like(cnt_acc)

    logits = logits_ref[...].astype(jnp.float32)       # (C, tile_cols)
    labels = labels_ref[...]                           # (1, tile_cols) int32

    # softmax over the class (sublane) axis.
    m = jnp.max(logits, axis=0, keepdims=True)
    e = jnp.exp(logits - m)
    p = e * pl.reciprocal(jnp.sum(e, axis=0, keepdims=True), approx=True)

    class_ids = jax.lax.broadcasted_iota(jnp.int32, (num_classes, tile_cols), 0)
    y_true = (labels == class_ids).astype(jnp.float32)

    if num_rows % tile_cols != 0:      # static: mask padded cols of last tile
        col_ids = (jax.lax.broadcasted_iota(jnp.int32, (1, tile_cols), 1)
                   + step * tile_cols)
        valid = (col_ids < num_rows).astype(jnp.float32)
        p = p * valid
        y_true = y_true * valid

    tp_acc[...] += jnp.sum(y_true * p, axis=1, keepdims=True)   # (C, 1)
    sp_acc[...] += jnp.sum(p, axis=1, keepdims=True)            # (C, 1)
    cnt_acc[...] += jnp.sum(y_true, axis=1, keepdims=True)      # (C, 1)

    @pl.when(step == pl.num_programs(0) - 1)
    def _finalize():
        out_ref[...] = _f1_from_counts(tp_acc[...], sp_acc[...], cnt_acc[...],
                                       epsilon, num_classes)


def f1_loss(y_pred: jax.Array, y_true: jax.Array, *, classes: int,
            epsilon: float = 1e-7, max_rows_per_tile: int = 2048,
            vmem_limit_bytes: int = 32 * 1024 * 1024) -> jax.Array:
    """Pallas implementation of F1_Loss.forward. Returns a scalar float32."""
    assert y_pred.ndim == 2
    assert y_true.ndim == 1
    n, c = y_pred.shape
    assert c == classes

    labels = y_true.astype(jnp.int32)
    itemsize = jnp.dtype(y_pred.dtype).itemsize

    if c >= 128:
        # Class axis is already lane-dense: keep (N, C), tile batch on sublanes.
        tile = _pick_tile(n, c, itemsize, multiple=8, max_tile=max_rows_per_tile)
        n_pad = _round_up(n, tile)
        logits = y_pred                      # native dtype; upcast per tile
        if n_pad != n:
            logits = jnp.pad(logits, ((0, n_pad - n), (0, 0)))
            labels = jnp.pad(labels, (0, n_pad - n), constant_values=-1)
        labels = labels.reshape(n_pad, 1)
        kernel = functools.partial(
            _f1_kernel_classes_on_lanes, epsilon=float(epsilon),
            num_classes=c, num_rows=n, tile_rows=tile)
        in_specs = [pl.BlockSpec((tile, 1), lambda i: (i, 0)),
                    pl.BlockSpec((tile, c), lambda i: (i, 0))]
        scratch = [pltpu.VMEM((1, c), jnp.float32) for _ in range(3)]
    else:
        # C << 128 wastes lanes: transpose so the batch axis maps to lanes.
        tile = _pick_tile(n, c, itemsize, multiple=128,
                          max_tile=max(128, max_rows_per_tile))
        n_pad = _round_up(n, tile)
        logits = y_pred.T                    # (C, N), native dtype
        if n_pad != n:
            logits = jnp.pad(logits, ((0, 0), (0, n_pad - n)))
            labels = jnp.pad(labels, (0, n_pad - n), constant_values=-1)
        labels = labels.reshape(1, n_pad)
        kernel = functools.partial(
            _f1_kernel_batch_on_lanes, epsilon=float(epsilon),
            num_classes=c, num_rows=n, tile_cols=tile)
        in_specs = [pl.BlockSpec((1, tile), lambda i: (0, i)),
                    pl.BlockSpec((c, tile), lambda i: (0, i))]
        scratch = [pltpu.VMEM((c, 1), jnp.float32) for _ in range(3)]

    grid = (n_pad // tile,)
    out = pl.pallas_call(
        kernel,
        out_shape=jax.ShapeDtypeStruct((1, 1), jnp.float32),
        grid_spec=pltpu.PrefetchScalarGridSpec(
            num_scalar_prefetch=0,
            grid=grid,
            in_specs=in_specs,
            out_specs=pl.BlockSpec((1, 1), lambda i: (0, 0)),
            scratch_shapes=scratch),
        compiler_params=pltpu.CompilerParams(
            dimension_semantics=("arbitrary",),   # reduction axis
            vmem_limit_bytes=vmem_limit_bytes),
    )(labels, logits)
    return out[0, 0]


def _f1_loss_ref(y_pred, y_true, classes, epsilon=1e-7):
    """Pure-JAX reference mirroring the PyTorch code."""
    y_true_oh = jax.nn.one_hot(y_true, classes, dtype=jnp.float32)
    p = jax.nn.softmax(y_pred.astype(jnp.float32), axis=1)
    tp = jnp.sum(y_true_oh * p, axis=0)
    fp = jnp.sum((1 - y_true_oh) * p, axis=0)
    fn = jnp.sum(y_true_oh * (1 - p), axis=0)
    precision = tp / (tp + fp + epsilon)
    recall = tp / (tp + fn + epsilon)
    f1 = 2 * (precision * recall) / (precision + recall + epsilon)
    f1 = jnp.clip(f1, epsilon, 1 - epsilon)
    return 1 - jnp.mean(f1)


def _check(y_pred, y_true, classes, **kw):
    loss = jax.block_until_ready(f1_loss(y_pred, y_true, classes=classes, **kw))
    ref = _f1_loss_ref(y_pred, y_true, classes)
    # Tolerance loosened slightly for the EUP approximate reciprocal in softmax.
    assert jnp.allclose(loss, ref, atol=2e-3, rtol=2e-3), (loss, ref)


if __name__ == "__main__":
    key = jax.random.PRNGKey(0)

    # Case 1: tiny C (< 128)  -> batch-on-lanes (transposed) path, single step.
    k1, k2, key = jax.random.split(key, 3)
    yp = jax.random.normal(k1, (8, 16), dtype=jnp.float32)
    yt = jax.random.randint(k2, (8,), 0, 16, dtype=jnp.int32)
    _check(yp, yt, 16)

    # Case 2: C >= 128, ragged batch, bf16 logits -> class-on-lanes + masking.
    k1, k2, key = jax.random.split(key, 3)
    yp = jax.random.normal(k1, (200, 128), dtype=jnp.float32).astype(jnp.bfloat16)
    yt = jax.random.randint(k2, (200,), 0, 128, dtype=jnp.int32)
    _check(yp, yt, 128)

    # Case 3: transposed path, multiple grid steps + masked last tile.
    k1, k2, key = jax.random.split(key, 3)
    yp = jax.random.normal(k1, (300, 10), dtype=jnp.float32)
    yt = jax.random.randint(k2, (300,), 0, 10, dtype=jnp.int32)
    _check(yp, yt, 10, max_rows_per_tile=128)

    # Case 4: class-on-lanes path, multiple grid steps + masked last tile.
    k1, k2, key = jax.random.split(key, 3)
    yp = jax.random.normal(k1, (600, 160), dtype=jnp.float32)
    yt = jax.random.randint(k2, (600,), 0, 160, dtype=jnp.int32)
    _check(yp, yt, 160, max_rows_per_tile=128)

    print("KERNEL_OK")
</pallas_src>

<mosaic_0001>
module attributes {stable_mosaic.version = 11 : i64} {
  func.func @_f1_kernel_batch_on_lanes(%arg0: i32, %arg1: memref<1x128xi32, #tpu.memory_space<vmem>>, %arg2: memref<16x128xf32, #tpu.memory_space<vmem>>, %arg3: memref<1x1xf32, #tpu.memory_space<vmem>>, %arg4: memref<16x1xf32, #tpu.memory_space<vmem>>, %arg5: memref<16x1xf32, #tpu.memory_space<vmem>>, %arg6: memref<16x1xf32, #tpu.memory_space<vmem>>) attributes {dimension_semantics = [#tpu.dimension_semantics<arbitrary>], iteration_bounds = array<i64: 1>, scalar_prefetch = 0 : i64, scratch_operands = 3 : i64, tpu.core_type = #tpu.core_type<tc>, window_params = [{transform_indices = @transform_0, window_bounds = array<i64: 1, 128>}, {transform_indices = @transform_1, window_bounds = array<i64: 16, 128>}, {pipeline_mode = #tpu.pipeline_mode<synchronous>, transform_indices = @transform_2, window_bounds = array<i64: 1, 1>}]} {
    %c0_i32 = arith.constant 0 : i32
    %0 = arith.cmpi eq, %arg0, %c0_i32 : i32
    %1 = arith.extui %0 : i1 to i32
    %c0_i32_0 = arith.constant 0 : i32
    %2 = arith.cmpi ne, %1, %c0_i32_0 : i32
    scf.if %2 {
      %cst_22 = arith.constant 0.000000e+00 : f32
      %51 = vector.broadcast %cst_22 : f32 to vector<16x1xf32>
      %c0_23 = arith.constant 0 : index
      %c0_24 = arith.constant 0 : index
      %52 = vector.load %arg4[%c0_23, %c0_24] : memref<16x1xf32, #tpu.memory_space<vmem>>, vector<16x1xf32>
      tpu.vector_store %arg4[%c0_23, %c0_24], %51 {strides = array<i32>} : memref<16x1xf32, #tpu.memory_space<vmem>>, vector<16x1xf32>,
      %cst_25 = arith.constant 0.000000e+00 : f32
      %53 = vector.broadcast %cst_25 : f32 to vector<16x1xf32>
      %c0_26 = arith.constant 0 : index
      %c0_27 = arith.constant 0 : index
      %54 = vector.load %arg5[%c0_26, %c0_27] : memref<16x1xf32, #tpu.memory_space<vmem>>, vector<16x1xf32>
      tpu.vector_store %arg5[%c0_26, %c0_27], %53 {strides = array<i32>} : memref<16x1xf32, #tpu.memory_space<vmem>>, vector<16x1xf32>,
      %cst_28 = arith.constant 0.000000e+00 : f32
      %55 = vector.broadcast %cst_28 : f32 to vector<16x1xf32>
      %c0_29 = arith.constant 0 : index
      %c0_30 = arith.constant 0 : index
      %56 = vector.load %arg6[%c0_29, %c0_30] : memref<16x1xf32, #tpu.memory_space<vmem>>, vector<16x1xf32>
      tpu.vector_store %arg6[%c0_29, %c0_30], %55 {strides = array<i32>} : memref<16x1xf32, #tpu.memory_space<vmem>>, vector<16x1xf32>,
    } else {
    }
    %c0 = arith.constant 0 : index
    %c0_1 = arith.constant 0 : index
    %3 = vector.load %arg2[%c0, %c0_1] : memref<16x128xf32, #tpu.memory_space<vmem>>, vector<16x128xf32>
    %c0_2 = arith.constant 0 : index
    %c0_3 = arith.constant 0 : index
    %4 = vector.load %arg1[%c0_2, %c0_3] : memref<1x128xi32, #tpu.memory_space<vmem>>, vector<1x128xi32>
    %cst = arith.constant dense<0xFF800000> : vector<128xf32>
    %5 = vector.multi_reduction <maximumf>, %3, %cst [0] : vector<16x128xf32> to vector<128xf32>
    %6 = vector.shape_cast %5 : vector<128xf32> to vector<1x128xf32>
    %7 = vector.broadcast %6 : vector<1x128xf32> to vector<16x128xf32>
    %8 = arith.subf %3, %7 : vector<16x128xf32>
    %9 = math.exp %8 : vector<16x128xf32>
    %cst_4 = arith.constant dense<0.000000e+00> : vector<128xf32>
    %10 = vector.multi_reduction <add>, %9, %cst_4 [0] : vector<16x128xf32> to vector<128xf32>
    %11 = vector.shape_cast %10 : vector<128xf32> to vector<1x128xf32>
    %12 = tpu.reciprocal %11 {approx = true} : vector<1x128xf32> -> vector<1x128xf32>
    %13 = vector.broadcast %12 : vector<1x128xf32> to vector<16x128xf32>
    %14 = arith.mulf %9, %13 : vector<16x128xf32>
    %15 = tpu.iota {dimensions = array<i32: 0>} : vector<16x128xi32>
    %16 = vector.broadcast %4 : vector<1x128xi32> to vector<16x128xi32>
    %17 = arith.cmpi eq, %16, %15 : vector<16x128xi32>
    %18 = arith.extui %17 : vector<16x128xi1> to vector<16x128xi32>
    %19 = arith.sitofp %18 : vector<16x128xi32> to vector<16x128xf32>
    %20 = tpu.iota {dimensions = array<i32: 1>} : vector<1x128xi32>
    %c128_i32 = arith.constant 128 : i32
    %21 = arith.muli %arg0, %c128_i32 : i32
    %22 = vector.broadcast %21 : i32 to vector<1x128xi32>
    %23 = arith.addi %20, %22 : vector<1x128xi32>
    %c8_i32 = arith.constant 8 : i32
    %24 = vector.broadcast %c8_i32 : i32 to vector<1x128xi32>
    %25 = arith.cmpi slt, %23, %24 : vector<1x128xi32>
    %26 = arith.extui %25 : vector<1x128xi1> to vector<1x128xi32>
    %27 = arith.sitofp %26 : vector<1x128xi32> to vector<1x128xf32>
    %28 = vector.broadcast %27 : vector<1x128xf32> to vector<16x128xf32>
    %29 = arith.mulf %14, %28 : vector<16x128xf32>
    %30 = vector.broadcast %27 : vector<1x128xf32> to vector<16x128xf32>
    %31 = arith.mulf %19, %30 : vector<16x128xf32>
    %c0_5 = arith.constant 0 : index
    %c0_6 = arith.constant 0 : index
    %32 = vector.load %arg4[%c0_5, %c0_6] : memref<16x1xf32, #tpu.memory_space<vmem>>, vector<16x1xf32>
    %33 = arith.mulf %31, %29 : vector<16x128xf32>
    %cst_7 = arith.constant dense<0.000000e+00> : vector<16xf32>
    %34 = vector.multi_reduction <add>, %33, %cst_7 [1] : vector<16x128xf32> to vector<16xf32>
    %35 = vector.shape_cast %34 : vector<16xf32> to vector<16x1xf32>
    %36 = arith.addf %32, %35 : vector<16x1xf32>
    %c0_8 = arith.constant 0 : index
    %c0_9 = arith.constant 0 : index
    %37 = vector.load %arg4[%c0_8, %c0_9] : memref<16x1xf32, #tpu.memory_space<vmem>>, vector<16x1xf32>
    tpu.vector_store %arg4[%c0_8, %c0_9], %36 {strides = array<i32>} : memref<16x1xf32, #tpu.memory_space<vmem>>, vector<16x1xf32>,
    %c0_10 = arith.constant 0 : index
    %c0_11 = arith.constant 0 : index
    %38 = vector.load %arg5[%c0_10, %c0_11] : memref<16x1xf32, #tpu.memory_space<vmem>>, vector<16x1xf32>
    %cst_12 = arith.constant dense<0.000000e+00> : vector<16xf32>
    %39 = vector.multi_reduction <add>, %29, %cst_12 [1] : vector<16x128xf32> to vector<16xf32>
    %40 = vector.shape_cast %39 : vector<16xf32> to vector<16x1xf32>
    %41 = arith.addf %38, %40 : vector<16x1xf32>
    %c0_13 = arith.constant 0 : index
    %c0_14 = arith.constant 0 : index
    %42 = vector.load %arg5[%c0_13, %c0_14] : memref<16x1xf32, #tpu.memory_space<vmem>>, vector<16x1xf32>
    tpu.vector_store %arg5[%c0_13, %c0_14], %41 {strides = array<i32>} : memref<16x1xf32, #tpu.memory_space<vmem>>, vector<16x1xf32>,
    %c0_15 = arith.constant 0 : index
    %c0_16 = arith.constant 0 : index
    %43 = vector.load %arg6[%c0_15, %c0_16] : memref<16x1xf32, #tpu.memory_space<vmem>>, vector<16x1xf32>
    %cst_17 = arith.constant dense<0.000000e+00> : vector<16xf32>
    %44 = vector.multi_reduction <add>, %31, %cst_17 [1] : vector<16x128xf32> to vector<16xf32>
    %45 = vector.shape_cast %44 : vector<16xf32> to vector<16x1xf32>
    %46 = arith.addf %43, %45 : vector<16x1xf32>
    %c0_18 = arith.constant 0 : index
    %c0_19 = arith.constant 0 : index
    %47 = vector.load %arg6[%c0_18, %c0_19] : memref<16x1xf32, #tpu.memory_space<vmem>>, vector<16x1xf32>
    tpu.vector_store %arg6[%c0_18, %c0_19], %46 {strides = array<i32>} : memref<16x1xf32, #tpu.memory_space<vmem>>, vector<16x1xf32>,
    %c0_i32_20 = arith.constant 0 : i32
    %48 = arith.cmpi eq, %arg0, %c0_i32_20 : i32
    %49 = arith.extui %48 : i1 to i32
    %c0_i32_21 = arith.constant 0 : i32
    %50 = arith.cmpi ne, %49, %c0_i32_21 : i32
    scf.if %50 {
      %c0_22 = arith.constant 0 : index
      %c0_23 = arith.constant 0 : index
      %51 = vector.load %arg4[%c0_22, %c0_23] : memref<16x1xf32, #tpu.memory_space<vmem>>, vector<16x1xf32>
      %c0_24 = arith.constant 0 : index
      %c0_25 = arith.constant 0 : index
      %52 = vector.load %arg5[%c0_24, %c0_25] : memref<16x1xf32, #tpu.memory_space<vmem>>, vector<16x1xf32>
      %c0_26 = arith.constant 0 : index
      %c0_27 = arith.constant 0 : index
      %53 = vector.load %arg6[%c0_26, %c0_27] : memref<16x1xf32, #tpu.memory_space<vmem>>, vector<16x1xf32>
      %54 = arith.subf %52, %51 : vector<16x1xf32>
      %55 = arith.subf %53, %51 : vector<16x1xf32>
      %56 = arith.addf %51, %54 : vector<16x1xf32>
      %cst_28 = arith.constant 1.000000e-07 : f32
      %57 = vector.broadcast %cst_28 : f32 to vector<16x1xf32>
      %58 = arith.addf %56, %57 : vector<16x1xf32>
      %59 = arith.divf %51, %58 : vector<16x1xf32>
      %60 = arith.addf %51, %55 : vector<16x1xf32>
      %cst_29 = arith.constant 1.000000e-07 : f32
      %61 = vector.broadcast %cst_29 : f32 to vector<16x1xf32>
      %62 = arith.addf %60, %61 : vector<16x1xf32>
      %63 = arith.divf %51, %62 : vector<16x1xf32>
      %64 = arith.mulf %59, %63 : vector<16x1xf32>
      %cst_30 = arith.constant 2.000000e+00 : f32
      %65 = vector.broadcast %cst_30 : f32 to vector<16x1xf32>
      %66 = arith.mulf %65, %64 : vector<16x1xf32>
      %67 = arith.addf %59, %63 : vector<16x1xf32>
      %cst_31 = arith.constant 1.000000e-07 : f32
      %68 = vector.broadcast %cst_31 : f32 to vector<16x1xf32>
      %69 = arith.addf %67, %68 : vector<16x1xf32>
      %70 = arith.divf %66, %69 : vector<16x1xf32>
      %cst_32 = arith.constant 1.000000e-07 : f32
      %cst_33 = arith.constant 0.99999988 : f32
      %71 = vector.broadcast %cst_32 : f32 to vector<16x1xf32>
      %72 = arith.maximumf %71, %70 : vector<16x1xf32>
      %73 = vector.broadcast %cst_33 : f32 to vector<16x1xf32>
      %74 = arith.minimumf %73, %72 : vector<16x1xf32>
      %cst_34 = arith.constant dense<0.000000e+00> : vector<1xf32>
      %75 = vector.multi_reduction <add>, %74, %cst_34 [0] : vector<16x1xf32> to vector<1xf32>
      %76 = vector.shape_cast %75 : vector<1xf32> to vector<1x1xf32>
      %cst_35 = arith.constant dense<0.000000e+00> : vector<1xf32>
      %77 = vector.multi_reduction <add>, %76, %cst_35 [1] : vector<1x1xf32> to vector<1xf32>
      %78 = vector.shape_cast %77 : vector<1xf32> to vector<1x1xf32>
      %cst_36 = arith.constant 1.600000e+01 : f32
      %79 = vector.broadcast %cst_36 : f32 to vector<1x1xf32>
      %80 = arith.divf %78, %79 : vector<1x1xf32>
      %cst_37 = arith.constant 1.000000e+00 : f32
      %81 = vector.broadcast %cst_37 : f32 to vector<1x1xf32>
      %82 = arith.subf %81, %80 : vector<1x1xf32>
      %c0_38 = arith.constant 0 : index
      %c0_39 = arith.constant 0 : index
      %83 = vector.load %arg3[%c0_38, %c0_39] : memref<1x1xf32, #tpu.memory_space<vmem>>, vector<1x1xf32>
      tpu.vector_store %arg3[%c0_38, %c0_39], %82 {strides = array<i32>} : memref<1x1xf32, #tpu.memory_space<vmem>>, vector<1x1xf32>,
    } else {
    }
    return
  }
  func.func @transform_0(%arg0: i32) -> (i32, i32) {
    %c0_i32 = arith.constant 0 : i32
    %c0_i32_0 = arith.constant 0 : i32
    return %c0_i32, %arg0 : i32, i32
  }
  func.func @transform_1(%arg0: i32) -> (i32, i32) {
    %c0_i32 = arith.constant 0 : i32
    %c0_i32_0 = arith.constant 0 : i32
    return %c0_i32, %arg0 : i32, i32
  }
  func.func @transform_2(%arg0: i32) -> (i32, i32) {
    %c0_i32 = arith.constant 0 : i32
    %c0_i32_0 = arith.constant 0 : i32
    %c0_i32_1 = arith.constant 0 : i32
    return %c0_i32, %c0_i32_0 : i32, i32
  }
}

</mosaic_0001>

<llo_original>
// kernel: tpu_custom_call.1
$region0: #{tpu_custom_call.1}
  #allocation0 [shape = 'u32[]', space=smem, size = 0x4, offset = 0x4, fixed_abs, tag = 'smem constant byte address 0x4 - core index']
  #allocation1 [shape = 'u32[144,128]{1,0:T(1,128)}', space=vmem, size = 0x12000, scoped, tag = 'internal scratch']
  #allocation2 [shape = 'f32[16,1]{1,0:T(8,128)}', space=vmem, size = 0x2000, scoped, tag = 'scratch operand']
  #allocation3 [shape = 'f32[16,1]{1,0:T(8,128)}', space=vmem, size = 0x2000, scoped, tag = 'scratch operand']
  #allocation4 [shape = 'f32[16,1]{1,0:T(8,128)}', space=vmem, size = 0x2000, scoped, tag = 'scratch operand']
  %s0 = inlined_call_operand.hbm [shape: s32[1,128], index: 0, kind: input, shape index: {}]
  %s1 = inlined_call_operand.hbm [shape: f32[16,128], index: 1, kind: input, shape index: {}]
  %s2 = inlined_call_operand.hbm [shape: f32[1,1], index: 2, kind: output, shape index: {}]
  %s3 = sld [smem:[#allocation0]]
  $region34: #{tpu_custom_call.1} parent=0
    _
  %s5 = ssub.s32 1, %s3
  %s6 = scalar_select 0, %s5, %s3
  $region1: #{tpu_custom_call.1} parent=0
    #allocation5 [shape = 'u8[512]{0}', space=vmem, size = 0x400, scoped, tag = 'input window, operand 0, single buffered']
    #allocation6 [shape = 's32[1]{0}', space=sflag, size = 0x4, scoped, tag = 'scoped memory for tpu_custom_call.1']
    #allocation7 [shape = 's32[1]{0}', space=sflag, size = 0x4, scoped, tag = 'scoped memory for tpu_custom_call.1']
    #allocation8 [shape = 'u8[8192]{0}', space=vmem, size = 0x2000, scoped, tag = 'input window, operand 1, single buffered']
    #allocation9 [shape = 's32[1]{0}', space=sflag, size = 0x4, scoped, tag = 'scoped memory for tpu_custom_call.1']
    #allocation10 [shape = 'u8[512]{0}', space=vmem, size = 0x400, scoped, tag = 'output window, operand 0, single buffered']
    %7 = vsyncpa [#allocation6], 0
    %8 = vsyncpa [#allocation9], 0
    %9 = vsyncpa [#allocation7], 0
    // Predicated region
    $region2: #{tpu_custom_call.1} parent=1 // pred_check
      _
    $region3: #{tpu_custom_call.1} parent=1 // pred_check_branch
      %11 = sbr.rel (0) target = $region5
    $region4: #{tpu_custom_call.1} parent=1 // pred_region
      %s13 = ssub.s32 16, 16
      %14 = vsyncadd [#allocation6], %s13
      %s16 = sshll.u32 [#allocation5], 4
      %s17 = int_to_ptr.vmem [resolvable:$true] %s16
      %19 = dma.hbm_to_vmem [thread:$0]  %s0, 16, %s17, [#allocation6]
    $region5: #{tpu_custom_call.1} parent=1 // pred_fallthru
      _
    // Predicated region
    $region6: #{tpu_custom_call.1} parent=1 // pred_check
      _
    $region7: #{tpu_custom_call.1} parent=1 // pred_check_branch
      %21 = sbr.rel (0) target = $region9
    $region8: #{tpu_custom_call.1} parent=1 // pred_region
      %s23 = ssub.s32 256, 256
      %24 = vsyncadd [#allocation9], %s23
      %s25 = sshll.u32 [#allocation8], 4
      %s26 = int_to_ptr.vmem [resolvable:$true] %s25
      %31 = dma.hbm_to_vmem [thread:$0]  %s1, 256, %s26, [#allocation9], 128, 128, 8
    $region9: #{tpu_custom_call.1} parent=1 // pred_fallthru
      _
    // Predicated region
    $region10: #{tpu_custom_call.1} parent=1 // pred_check
      _
    $region11: #{tpu_custom_call.1} parent=1 // pred_check_branch
      %33 = sbr.rel (0) target = $region13
    $region12: #{tpu_custom_call.1} parent=1 // pred_region
      %34 = dma.done [#allocation6], 16
    $region13: #{tpu_custom_call.1} parent=1 // pred_fallthru
      _
    // Predicated region
    $region14: #{tpu_custom_call.1} parent=1 // pred_check
      _
    $region15: #{tpu_custom_call.1} parent=1 // pred_check_branch
      %36 = sbr.rel (0) target = $region17
    $region16: #{tpu_custom_call.1} parent=1 // pred_region
      %37 = dma.done [#allocation9], 256
    $region17: #{tpu_custom_call.1} parent=1 // pred_fallthru
      _
    %p38 = scmp.eq.s32.totalorder 0, 0
    // Predicated region
    $region18: #{tpu_custom_call.1} parent=1 // pred_check
      %p39 = pneg %p38
    $region19: #{tpu_custom_call.1} parent=1 // pred_check_branch
      %41 = sbr.rel (%p39) target = $region21
    $region20: #{tpu_custom_call.1} parent=1 // pred_region
      %vm42 = vcmask 7168
      %43 = vst.msk [vmem:[#allocation2] sm:$0xff] %vm42, 0.0
      %44 = vst.msk [vmem:[#allocation2 + $0x8] sm:$0xff] %vm42, 0.0
      %45 = vst.msk [vmem:[#allocation3] sm:$0xff] %vm42, 0.0
      %46 = vst.msk [vmem:[#allocation3 + $0x8] sm:$0xff] %vm42, 0.0
      %47 = vst.msk [vmem:[#allocation4] sm:$0xff] %vm42, 0.0
      %48 = vst.msk [vmem:[#allocation4 + $0x8] sm:$0xff] %vm42, 0.0
    $region21: #{tpu_custom_call.1} parent=1 // pred_fallthru
      _
    %v49 = vld [vmem:[#allocation8] sm:$0xff]
    %v50 = vld [vmem:[#allocation8 + $0x8] sm:$0xff]
    %v51 = vld [vmem:[#allocation5] sm:$0x1]
    %v52 = vmax.f32 %v49, %v50
    %v53 = vrot.slane %v52, 4
    %v54 = vmax.f32 %v52, %v53
    %v55 = vrot.slane %v54, 2
    %v56 = vmax.f32 %v54, %v55
    %v57 = vrot.slane %v56, 1
    %v58 = vmax.f32 %v56, %v57
    %v59 = vsub.f32 %v49, %v58
    %v60 = vsub.f32 %v50, %v58
    %v61 = vmul.f32 %v59, 1.442695
    %v62 = vpow.pop %v61
    %v63 = vmul.f32 %v60, 1.442695
    %v64 = vpow.pop %v63
    %v65 = vadd.f32 %v62, %v64
    %v66 = vrot.slane %v65, 4
    %v67 = vadd.f32 %v65, %v66
    %v68 = vrot.slane %v67, 2
    %v69 = vadd.f32 %v67, %v68
    %v70 = vrot.slane %v69, 1
    %v71 = vadd.f32 %v69, %v70
    %v72 = vrcp.pop %v71
    %v73 = vmul.f32 %v62, %v72
    %v74 = vmul.f32 %v64, %v72
    %v75 = vlaneseq
    %v76 = vshrl.u32 %v75, 7
    %v77 = vadd.s32 %v76, 8
    %v78 = vlaneseq
    %v79 = vshrl.u32 %v78, 7
    %v80 = vsub.s32 0, %v79
    %v81 = vrot.slane %v51, %v80
    %vm82 = vcmp.eq.s32.totalorder %v81, %v76
    %vm83 = vcmp.eq.s32.totalorder %v81, %v77
    %v84 = vsel %vm82, 1, 0
    %v85 = vsel %vm83, 1, 0
    %v86 = vcvt.s32.f32 %v84
    %v87 = vcvt.s32.f32 %v85
    %v88 = vlaneseq
    %v89 = vand.u32 %v88, 127
    %s90 = smul.u32 0, 128
    %v91 = vstv %s90
    %v92 = vadd.s32 %v89, %v91
    %vm93 = vcmp.lt.s32.totalorder %v92, 8
    %v94 = vsel %vm93, 1, 0
    %v95 = vcvt.s32.f32 %v94
    %v96 = vmul.f32 %v73, %v95
    %v97 = vmul.f32 %v74, %v95
    %v98 = vmul.f32 %v86, %v95
    %v99 = vmul.f32 %v87, %v95
    %v100 = vld [vmem:[#allocation2] sm:$0xff]
    %v101 = vld [vmem:[#allocation2 + $0x8] sm:$0xff]
    %v102 = vmul.f32 %v98, %v96
    %v103 = vmul.f32 %v99, %v97
    %104 = vadd.xlane.f32.xlu0 %v102
    %v105 = vpop.xlane.xlu0 %104
    %106 = vadd.xlane.f32.xlu0 %v103
    %v107 = vpop.xlane.xlu0 %106
    %v108 = vadd.f32 %v100, %v105
    %v109 = vadd.f32 %v101, %v107
    %vm110 = vcmask 7168
    %111 = vst.msk [vmem:[#allocation2] sm:$0xff] %vm110, %v108
    %112 = vst.msk [vmem:[#allocation2 + $0x8] sm:$0xff] %vm110, %v109
    %v113 = vld [vmem:[#allocation3] sm:$0xff]
    %v114 = vld [vmem:[#allocation3 + $0x8] sm:$0xff]
    %115 = vadd.xlane.f32.xlu0 %v96
    %v116 = vpop.xlane.xlu0 %115
    %117 = vadd.xlane.f32.xlu0 %v97
    %v118 = vpop.xlane.xlu0 %117
    %v119 = vadd.f32 %v113, %v116
    %v120 = vadd.f32 %v114, %v118
    %121 = vst.msk [vmem:[#allocation3] sm:$0xff] %vm110, %v119
    %122 = vst.msk [vmem:[#allocation3 + $0x8] sm:$0xff] %vm110, %v120
    %v123 = vld [vmem:[#allocation4] sm:$0xff]
    %v124 = vld [vmem:[#allocation4 + $0x8] sm:$0xff]
    %125 = vadd.xlane.f32.xlu0 %v98
    %v126 = vpop.xlane.xlu0 %125
    %127 = vadd.xlane.f32.xlu0 %v99
    %v128 = vpop.xlane.xlu0 %127
    %v129 = vadd.f32 %v123, %v126
    %v130 = vadd.f32 %v124, %v128
    %131 = vst.msk [vmem:[#allocation4] sm:$0xff] %vm110, %v129
    %132 = vst.msk [vmem:[#allocation4 + $0x8] sm:$0xff] %vm110, %v130
    // Predicated region
    $region22: #{tpu_custom_call.1} parent=1 // pred_check
      %p133 = pneg %p38
    $region23: #{tpu_custom_call.1} parent=1 // pred_check_branch
      %135 = sbr.rel (%p133) target = $region25
    $region24: #{tpu_custom_call.1} parent=1 // pred_region
      %v136 = vld [vmem:[#allocation2] sm:$0xff]
      %v137 = vld [vmem:[#allocation2 + $0x8] sm:$0xff]
      %v138 = vld [vmem:[#allocation3] sm:$0xff]
      %v139 = vld [vmem:[#allocation3 + $0x8] sm:$0xff]
      %v140 = vld [vmem:[#allocation4] sm:$0xff]
      %v141 = vld [vmem:[#allocation4 + $0x8] sm:$0xff]
      %v142 = vsub.f32 %v138, %v136
      %v143 = vsub.f32 %v139, %v137
      %v144 = vsub.f32 %v140, %v136
      %v145 = vsub.f32 %v141, %v137
      %v146 = vadd.f32 %v136, %v142
      %v147 = vadd.f32 %v137, %v143
      %v148 = vadd.f32 %v146, 1e-07
      %v149 = vadd.f32 %v147, 1e-07
      %v150 = vrcp.pop %v148
      %v151 = vmul.f32 %v136, %v150
      %v152 = vrcp.pop %v149
      %v153 = vmul.f32 %v137, %v152
      %v154 = vadd.f32 %v136, %v144
      %v155 = vadd.f32 %v137, %v145
      %v156 = vadd.f32 %v154, 1e-07
      %v157 = vadd.f32 %v155, 1e-07
      %v158 = vrcp.pop %v156
      %v159 = vmul.f32 %v136, %v158
      %v160 = vrcp.pop %v157
      %v161 = vmul.f32 %v137, %v160
      %v162 = vmul.f32 %v151, %v159
      %v163 = vmul.f32 %v153, %v161
      %v164 = vmul.f32 %v162, 2.0
      %v165 = vmul.f32 %v163, 2.0
      %v166 = vadd.f32 %v151, %v159
      %v167 = vadd.f32 %v153, %v161
      %v168 = vadd.f32 %v166, 1e-07
      %v169 = vadd.f32 %v167, 1e-07
      %v170 = vrcp.pop %v168
      %v171 = vmul.f32 %v164, %v170
      %v172 = vrcp.pop %v169
      %v173 = vmul.f32 %v165, %v172
      %v174 = vmax.f32 %v171, 1e-07
      %v175 = vmax.f32 %v173, 1e-07
      %v176 = vmin.f32 %v174, 0.9999999
      %v177 = vmin.f32 %v175, 0.9999999
      %v178 = vsel %vm110, %v176, 0.0
      %v179 = vsel %vm110, %v177, 0.0
      %v180 = vadd.f32 %v178, %v179
      %v181 = vrot.slane %v180, 4
      %v182 = vadd.f32 %v180, %v181
      %v183 = vrot.slane %v182, 2
      %v184 = vadd.f32 %v182, %v183
      %v185 = vrot.slane %v184, 1
      %v186 = vadd.f32 %v184, %v185
      %v187 = vadd.f32 %v186, 0.0
      %v188 = vrcp.pop 16.0
      %v189 = vmul.f32 %v187, %v188
      %v190 = vsub.f32 1.0, %v189
      %vm191 = vcmask 0
      %192 = vst.msk [vmem:[#allocation10] sm:$0x1] %vm191, %v190
    $region25: #{tpu_custom_call.1} parent=1 // pred_fallthru
      _
    // Predicated region
    $region26: #{tpu_custom_call.1} parent=1 // pred_check
      _
    $region27: #{tpu_custom_call.1} parent=1 // pred_check_branch
      %194 = sbr.rel (0) target = $region29
    $region28: #{tpu_custom_call.1} parent=1 // pred_region
      %s196 = ssub.s32 16, 16
      %197 = vsyncadd [#allocation7], %s196
      %s199 = sshll.u32 [#allocation10], 4
      %s200 = int_to_ptr.vmem [resolvable:$true] %s199
      %202 = dma.vmem_to_hbm [thread:$0]  %s200, 16, %s2, [#allocation7]
    $region29: #{tpu_custom_call.1} parent=1 // pred_fallthru
      _
    // Predicated region
    $region30: #{tpu_custom_call.1} parent=1 // pred_check
      _
    $region31: #{tpu_custom_call.1} parent=1 // pred_check_branch
      %204 = sbr.rel (0) target = $region33
    $region32: #{tpu_custom_call.1} parent=1 // pred_region
      %205 = dma.done [#allocation7], 16
    $region33: #{tpu_custom_call.1} parent=1 // pred_fallthru
      _
    %206 = vsyncpa [#allocation6], 1
    %207 = vsyncpa [#allocation9], 1
    %208 = vsyncpa [#allocation7], 1

</llo_original>
